<compile_context>
chip_gen: v7x
topology: tpu7x:2x2x1
jax: 0.10.0
libtpu: 0.0.40
codegen_flags: <defaults>
</compile_context>

<pallas_src>
import functools

import jax
import jax.numpy as jnp
import numpy as np
from jax import lax
from jax.experimental import pallas as pl
from jax.experimental.pallas import tpu as pltpu

_LANE = 128
_SUBLANE = 8


def _hw_config():
    """Defensive trace-time hardware query.

    Returns (block_elems_budget, vmem_limit_bytes, num_tensorcores).
    Defaults are safe on every generation (sized for v7x's 64 MiB VMEM).
    """
    block_bytes = 2 << 20        # per-input block, f32-equivalent accounting
    vmem_limit = 32 << 20
    cores = 1
    try:
        info = pltpu.get_tpu_info()
        cap = None
        for attr in ("vmem_capacity_bytes", "vmem_bytes", "vmem_size_bytes"):
            v = getattr(info, attr, None)
            if isinstance(v, (int, np.integer)) and v > 0:
                cap = int(v)
                break
        if cap is not None and cap >= 96 * (1 << 20):
            # v5e / v6e: 128 MiB physical VMEM -> bigger blocks amortize the
            # ~0.35us per-grid-step overhead (closer to the HBM roofline).
            block_bytes = 4 << 20
            vmem_limit = 64 << 20
        for attr in ("num_cores", "core_count", "num_tensorcores"):
            v = getattr(info, attr, None)
            if isinstance(v, (int, np.integer)) and v > 0:
                cores = max(1, int(v))
                break
    except Exception:
        pass
    return block_bytes // 4, vmem_limit, cores


def _bce_dice_partial_kernel(p_ref, t_ref, out_ref, *, rows, chunks_per_split,
                             masked):
    """Consume one (b_tile, tile_rows, 128) chunk; accumulate lane-dense sums.

    out_ref: (1, 4, b_tile, 128) f32 accumulator, resident across the chunk
    axis:
      [0]  per-batch sums of t*log(p) + (1-t)*log(1-p)   (negated BCE terms)
      [1]  per-batch sums of trunc(p) * trunc(t)
      [2]  per-batch sums of trunc(p)
      [3]  per-batch sums of trunc(t)
    """
    c = pl.program_id(2)

    @pl.when(c == 0)
    def _init():
        out_ref[...] = jnp.zeros_like(out_ref)

    p = p_ref[...].astype(jnp.float32)
    t = t_ref[...].astype(jnp.float32)

    if masked:
        # Ragged row tail (and any fully-overrun chunk of the last split):
        # zero the out-of-range elements. A (p=0, t=0) element contributes
        # exactly 0 to every accumulated sum (BCE term is 0 via the log
        # clamp, Dice floors are 0).
        tile_rows = p.shape[1]
        row_start = (pl.program_id(0) * chunks_per_split + c) * tile_rows
        row_ids = lax.broadcasted_iota(jnp.int32, p.shape, 1) + row_start
        valid = row_ids < rows
        p = jnp.where(valid, p, 0.0)
        t = jnp.where(valid, t, 0.0)

    # BCE with PyTorch's clamp of the log terms at -100, restructured as
    # t*(log_p - log_1mp) + log_1mp (3 VALU ops/elem). The overall negation
    # and the 1/(B*n) mean are applied in the wrapper epilogue.
    log_p = jnp.maximum(jnp.log(p), -100.0)
    log_1mp = jnp.maximum(jnp.log(1.0 - p), -100.0)
    bce_neg = t * (log_p - log_1mp) + log_1mp

    # Dice uses `.long()`-truncated tensors; BCELoss inputs/targets are >= 0,
    # so floor == truncation toward zero (single VALU op).
    p_i = jnp.floor(p)
    t_i = jnp.floor(t)

    # Reduce only over the row axis -> lane-dense (b_tile, 128) partials and
    # full-width unmasked accumulator stores (no per-chunk cross-lane XLU
    # reduce, no single-lane vst.msk read-modify-writes).
    out_ref[0, 0, :, :] = out_ref[0, 0, :, :] + jnp.sum(bce_neg, axis=1)
    out_ref[0, 1, :, :] = out_ref[0, 1, :, :] + jnp.sum(p_i * t_i, axis=1)
    out_ref[0, 2, :, :] = out_ref[0, 2, :, :] + jnp.sum(p_i, axis=1)
    out_ref[0, 3, :, :] = out_ref[0, 3, :, :] + jnp.sum(t_i, axis=1)


def bce_and_dice_loss(predict, target, beta=0.5):
    """predict, target: (B, C, H, W) probability / mask tensors (NCHW).

    Inputs keep their native dtype; pass bf16 to halve HBM traffic (the
    kernel upcasts to f32 in VMEM; 0/1 targets are exact in bf16).
    """
    B = predict.shape[0]
    n = int(np.prod(predict.shape[1:]))

    elems_budget, vmem_limit, cores = _hw_config()

    p2 = jnp.reshape(predict, (B, n))
    t2 = jnp.reshape(target, (B, n))

    # Lane-dense view: each sample becomes (rows, 128). Only a tiny lane
    # remainder pad remains (when n % 128 != 0); row-chunk raggedness is
    # handled inside the kernel, so no full HBM round trip for unaligned
    # row counts.
    rows = -(-n // _LANE)
    lane_pad = rows * _LANE - n
    if lane_pad:
        # Zero padding is mathematically neutral: (p=0, t=0) contributes 0
        # to every sum (log clamp makes the BCE term exactly 0).
        p2 = jnp.pad(p2, ((0, 0), (0, lane_pad)))
        t2 = jnp.pad(t2, ((0, 0), (0, lane_pad)))
    p3 = p2.reshape(B, rows, _LANE)
    t3 = t2.reshape(B, rows, _LANE)

    # ---- batch tiling (guards very large B; b_blocks == 1 typically) -------
    max_b = max(1, elems_budget // (_SUBLANE * _LANE))
    if B <= max_b:
        b_tile, b_blocks = B, 1
    else:
        b_tile = max(_SUBLANE, (max_b // _SUBLANE) * _SUBLANE)
        b_blocks = -(-B // b_tile)
    b_total = b_blocks * b_tile

    # ---- row tiling ---------------------------------------------------------
    rows_budget = max(_SUBLANE,
                      (elems_budget // (b_tile * _LANE)) // _SUBLANE * _SUBLANE)

    splits = max(1, cores)
    if splits > 1 and rows < 2 * splits * _SUBLANE:
        splits = 1  # too little work to split across TensorCores

    if splits > 1:
        # Give each core at least ~2 chunks so its DMA pipeline has depth.
        cap = max(_SUBLANE,
                  min(rows_budget, (rows // (2 * splits)) // _SUBLANE * _SUBLANE))
    else:
        cap = rows_budget

    if rows <= cap:
        tile_rows = rows                       # full extent: always legal
    else:
        # Prefer a divisor of rows (no ragged tail at all); otherwise take
        # the largest tile and mask the tail inside the kernel.
        tile_rows = None
        r = (cap // _SUBLANE) * _SUBLANE
        while r >= _SUBLANE:
            if rows % r == 0:
                tile_rows = r
                break
            r -= _SUBLANE
        if tile_rows is None or tile_rows * 4 < cap:
            tile_rows = cap

    chunks_total = -(-rows // tile_rows)
    if chunks_total < splits:
        splits = 1
    chunks_per_split = -(-chunks_total // splits)
    masked = (splits * chunks_per_split * tile_rows) != rows
    clamp_needed = splits * chunks_per_split > chunks_total
    last_block = chunks_total - 1

    if clamp_needed:
        # Overrun chunks of the last split: clamp the block index so the DMA
        # never starts fully out of bounds; the in-kernel row mask (based on
        # the *unclamped* grid index) zeroes their contribution.
        def in_map(s, b, c):
            return (b, jnp.minimum(s * chunks_per_split + c, last_block), 0)
    else:
        def in_map(s, b, c):
            return (b, s * chunks_per_split + c, 0)

    def out_map(s, b, c):
        return (s, 0, b, 0)

    kernel = functools.partial(
        _bce_dice_partial_kernel,
        rows=rows, chunks_per_split=chunks_per_split, masked=masked)

    elems = B * n
    in_bytes = elems * (jnp.dtype(predict.dtype).itemsize
                        + jnp.dtype(target.dtype).itemsize)
    cost = pl.CostEstimate(
        flops=14 * elems,
        transcendentals=2 * elems,
        bytes_accessed=in_bytes + splits * 4 * b_total * _LANE * 4,
    )

    partials = pl.pallas_call(
        kernel,
        out_shape=jax.ShapeDtypeStruct((splits, 4, b_total, _LANE), jnp.float32),
        grid_spec=pltpu.PrefetchScalarGridSpec(
            num_scalar_prefetch=0,
            grid=(splits, b_blocks, chunks_per_split),
            in_specs=[
                pl.BlockSpec((b_tile, tile_rows, _LANE), in_map),
                pl.BlockSpec((b_tile, tile_rows, _LANE), in_map),
            ],
            out_specs=pl.BlockSpec((1, 4, b_tile, _LANE), out_map),
        ),
        compiler_params=pltpu.CompilerParams(
            dimension_semantics=("parallel", "parallel", "arbitrary"),
            vmem_limit_bytes=vmem_limit,
        ),
        cost_estimate=cost,
    )(p3, t3)

    # Tiny epilogue (a few KiB): fold splits, drop batch-tile overrun rows,
    # do the single lane reduction, negate the hoisted BCE sign.
    acc = jnp.sum(partials, axis=0)[:, :B, :]          # (4, B, 128)
    per_batch = jnp.sum(acc, axis=-1)                   # (4, B)
    bce = -jnp.sum(per_batch[0]) / float(B * n)         # mean over ALL elems
    inter = per_batch[1]
    union = per_batch[2] + per_batch[3]
    # Faithful to the PyTorch module: no smooth term -> an all-zero truncated
    # batch element divides by zero (inf/nan), same as the original.
    dice = jnp.mean(1.0 - 2.0 * inter / union)
    return beta * bce + (1.0 - beta) * dice


def _reference(predict, target, beta=0.5):
    """Pure-numpy reference mirroring the PyTorch module."""
    p = np.asarray(predict, dtype=np.float64)
    t = np.asarray(target, dtype=np.float64)
    log_p = np.maximum(np.log(p), -100.0)
    log_1mp = np.maximum(np.log(1.0 - p), -100.0)
    bce = np.mean(-(t * log_p + (1.0 - t) * log_1mp))
    pi = p.astype(np.int64)
    ti = t.astype(np.int64)
    B = p.shape[0]
    dice = 0.0
    for b in range(B):
        inter = np.sum(pi[b] * ti[b])
        union = np.sum(pi[b]) + np.sum(ti[b])
        dice += 1.0 - 2.0 * inter / union
    dice /= B
    return beta * bce + (1.0 - beta) * dice


if __name__ == "__main__":
    key = jax.random.PRNGKey(0)
    kp, kt = jax.random.split(key)

    B, C, H, W = 2, 4, 16, 16
    # predict: probabilities in (0,1) (as fed to nn.BCELoss after a sigmoid)
    predict = jax.nn.sigmoid(jax.random.normal(kp, (B, C, H, W), jnp.float32))
    # target: binary ground-truth mask as float
    target = jax.random.bernoulli(kt, 0.5, (B, C, H, W)).astype(jnp.float32)

    loss_fn = jax.jit(functools.partial(bce_and_dice_loss, beta=0.5))
    loss = jax.block_until_ready(loss_fn(predict, target))

    ref = _reference(np.array(predict), np.array(target), beta=0.5)
    assert np.isclose(float(loss), ref, rtol=1e-4, atol=1e-5), (float(loss), ref)

    print("KERNEL_OK")
</pallas_src>

<mosaic_0001>
module attributes {stable_mosaic.version = 11 : i64} {
  func.func @_bce_dice_partial_kernel(%arg0: i32, %arg1: i32, %arg2: i32, %arg3: memref<2x8x128xf32, #tpu.memory_space<vmem>>, %arg4: memref<2x8x128xf32, #tpu.memory_space<vmem>>, %arg5: memref<1x4x2x128xf32, #tpu.memory_space<vmem>>) attributes {dimension_semantics = [#tpu.dimension_semantics<parallel>, #tpu.dimension_semantics<parallel>, #tpu.dimension_semantics<arbitrary>], iteration_bounds = array<i64: 1, 1, 1>, scalar_prefetch = 0 : i64, scratch_operands = 0 : i64, tpu.core_type = #tpu.core_type<tc>, window_params = [{transform_indices = @transform_0, window_bounds = array<i64: 2, 8, 128>}, {transform_indices = @transform_1, window_bounds = array<i64: 2, 8, 128>}, {transform_indices = @transform_2, window_bounds = array<i64: 1, 4, 2, 128>}]} {
    %c0_i32 = arith.constant 0 : i32
    %0 = arith.cmpi eq, %arg2, %c0_i32 : i32
    %1 = arith.extui %0 : i1 to i32
    %c0_i32_0 = arith.constant 0 : i32
    %2 = arith.cmpi ne, %1, %c0_i32_0 : i32
    scf.if %2 {
      %cst_41 = arith.constant 0.000000e+00 : f32
      %47 = vector.broadcast %cst_41 : f32 to vector<1x4x2x128xf32>
      %c0_42 = arith.constant 0 : index
      %c0_43 = arith.constant 0 : index
      %c0_44 = arith.constant 0 : index
      %c0_45 = arith.constant 0 : index
      %48 = vector.load %arg5[%c0_42, %c0_43, %c0_44, %c0_45] : memref<1x4x2x128xf32, #tpu.memory_space<vmem>>, vector<1x4x2x128xf32>
      tpu.vector_store %arg5[%c0_42, %c0_43, %c0_44, %c0_45], %47 {strides = array<i32>} : memref<1x4x2x128xf32, #tpu.memory_space<vmem>>, vector<1x4x2x128xf32>,
    } else {
    }
    %c0 = arith.constant 0 : index
    %c0_1 = arith.constant 0 : index
    %c0_2 = arith.constant 0 : index
    %3 = vector.load %arg3[%c0, %c0_1, %c0_2] : memref<2x8x128xf32, #tpu.memory_space<vmem>>, vector<2x8x128xf32>
    %c0_3 = arith.constant 0 : index
    %c0_4 = arith.constant 0 : index
    %c0_5 = arith.constant 0 : index
    %4 = vector.load %arg4[%c0_3, %c0_4, %c0_5] : memref<2x8x128xf32, #tpu.memory_space<vmem>>, vector<2x8x128xf32>
    %5 = math.log %3 : vector<2x8x128xf32>
    %cst = arith.constant -1.000000e+02 : f32
    %6 = vector.broadcast %cst : f32 to vector<2x8x128xf32>
    %7 = arith.maximumf %5, %6 : vector<2x8x128xf32>
    %cst_6 = arith.constant 1.000000e+00 : f32
    %8 = vector.broadcast %cst_6 : f32 to vector<2x8x128xf32>
    %9 = arith.subf %8, %3 : vector<2x8x128xf32>
    %10 = math.log %9 : vector<2x8x128xf32>
    %cst_7 = arith.constant -1.000000e+02 : f32
    %11 = vector.broadcast %cst_7 : f32 to vector<2x8x128xf32>
    %12 = arith.maximumf %10, %11 : vector<2x8x128xf32>
    %13 = arith.subf %7, %12 : vector<2x8x128xf32>
    %14 = arith.mulf %4, %13 : vector<2x8x128xf32>
    %15 = arith.addf %14, %12 : vector<2x8x128xf32>
    %16 = math.floor %3 : vector<2x8x128xf32>
    %17 = math.floor %4 : vector<2x8x128xf32>
    %c0_8 = arith.constant 0 : index
    %c0_9 = arith.constant 0 : index
    %c0_10 = arith.constant 0 : index
    %c0_11 = arith.constant 0 : index
    %18 = vector.load %arg5[%c0_8, %c0_9, %c0_10, %c0_11] : memref<1x4x2x128xf32, #tpu.memory_space<vmem>>, vector<1x1x2x128xf32>
    %19 = vector.shape_cast %18 : vector<1x1x2x128xf32> to vector<2x128xf32>
    %cst_12 = arith.constant dense<0.000000e+00> : vector<2x128xf32>
    %20 = vector.multi_reduction <add>, %15, %cst_12 [1] : vector<2x8x128xf32> to vector<2x128xf32>
    %21 = arith.addf %19, %20 : vector<2x128xf32>
    %c0_13 = arith.constant 0 : index
    %c0_14 = arith.constant 0 : index
    %c0_15 = arith.constant 0 : index
    %c0_16 = arith.constant 0 : index
    %22 = vector.load %arg5[%c0_13, %c0_14, %c0_15, %c0_16] : memref<1x4x2x128xf32, #tpu.memory_space<vmem>>, vector<1x1x2x128xf32>
    %23 = vector.shape_cast %22 : vector<1x1x2x128xf32> to vector<2x128xf32>
    %24 = vector.shape_cast %21 : vector<2x128xf32> to vector<1x1x2x128xf32>
    tpu.vector_store %arg5[%c0_13, %c0_14, %c0_15, %c0_16], %24 {strides = array<i32>} : memref<1x4x2x128xf32, #tpu.memory_space<vmem>>, vector<1x1x2x128xf32>,
    %c0_17 = arith.constant 0 : index
    %c1 = arith.constant 1 : index
    %c0_18 = arith.constant 0 : index
    %c0_19 = arith.constant 0 : index
    %25 = vector.load %arg5[%c0_17, %c1, %c0_18, %c0_19] : memref<1x4x2x128xf32, #tpu.memory_space<vmem>>, vector<1x1x2x128xf32>
    %26 = vector.shape_cast %25 : vector<1x1x2x128xf32> to vector<2x128xf32>
    %27 = arith.mulf %16, %17 : vector<2x8x128xf32>
    %cst_20 = arith.constant dense<0.000000e+00> : vector<2x128xf32>
    %28 = vector.multi_reduction <add>, %27, %cst_20 [1] : vector<2x8x128xf32> to vector<2x128xf32>
    %29 = arith.addf %26, %28 : vector<2x128xf32>
    %c0_21 = arith.constant 0 : index
    %c1_22 = arith.constant 1 : index
    %c0_23 = arith.constant 0 : index
    %c0_24 = arith.constant 0 : index
    %30 = vector.load %arg5[%c0_21, %c1_22, %c0_23, %c0_24] : memref<1x4x2x128xf32, #tpu.memory_space<vmem>>, vector<1x1x2x128xf32>
    %31 = vector.shape_cast %30 : vector<1x1x2x128xf32> to vector<2x128xf32>
    %32 = vector.shape_cast %29 : vector<2x128xf32> to vector<1x1x2x128xf32>
    tpu.vector_store %arg5[%c0_21, %c1_22, %c0_23, %c0_24], %32 {strides = array<i32>} : memref<1x4x2x128xf32, #tpu.memory_space<vmem>>, vector<1x1x2x128xf32>,
    %c0_25 = arith.constant 0 : index
    %c2 = arith.constant 2 : index
    %c0_26 = arith.constant 0 : index
    %c0_27 = arith.constant 0 : index
    %33 = vector.load %arg5[%c0_25, %c2, %c0_26, %c0_27] : memref<1x4x2x128xf32, #tpu.memory_space<vmem>>, vector<1x1x2x128xf32>
    %34 = vector.shape_cast %33 : vector<1x1x2x128xf32> to vector<2x128xf32>
    %cst_28 = arith.constant dense<0.000000e+00> : vector<2x128xf32>
    %35 = vector.multi_reduction <add>, %16, %cst_28 [1] : vector<2x8x128xf32> to vector<2x128xf32>
    %36 = arith.addf %34, %35 : vector<2x128xf32>
    %c0_29 = arith.constant 0 : index
    %c2_30 = arith.constant 2 : index
    %c0_31 = arith.constant 0 : index
    %c0_32 = arith.constant 0 : index
    %37 = vector.load %arg5[%c0_29, %c2_30, %c0_31, %c0_32] : memref<1x4x2x128xf32, #tpu.memory_space<vmem>>, vector<1x1x2x128xf32>
    %38 = vector.shape_cast %37 : vector<1x1x2x128xf32> to vector<2x128xf32>
    %39 = vector.shape_cast %36 : vector<2x128xf32> to vector<1x1x2x128xf32>
    tpu.vector_store %arg5[%c0_29, %c2_30, %c0_31, %c0_32], %39 {strides = array<i32>} : memref<1x4x2x128xf32, #tpu.memory_space<vmem>>, vector<1x1x2x128xf32>,
    %c0_33 = arith.constant 0 : index
    %c3 = arith.constant 3 : index
    %c0_34 = arith.constant 0 : index
    %c0_35 = arith.constant 0 : index
    %40 = vector.load %arg5[%c0_33, %c3, %c0_34, %c0_35] : memref<1x4x2x128xf32, #tpu.memory_space<vmem>>, vector<1x1x2x128xf32>
    %41 = vector.shape_cast %40 : vector<1x1x2x128xf32> to vector<2x128xf32>
    %cst_36 = arith.constant dense<0.000000e+00> : vector<2x128xf32>
    %42 = vector.multi_reduction <add>, %17, %cst_36 [1] : vector<2x8x128xf32> to vector<2x128xf32>
    %43 = arith.addf %41, %42 : vector<2x128xf32>
    %c0_37 = arith.constant 0 : index
    %c3_38 = arith.constant 3 : index
    %c0_39 = arith.constant 0 : index
    %c0_40 = arith.constant 0 : index
    %44 = vector.load %arg5[%c0_37, %c3_38, %c0_39, %c0_40] : memref<1x4x2x128xf32, #tpu.memory_space<vmem>>, vector<1x1x2x128xf32>
    %45 = vector.shape_cast %44 : vector<1x1x2x128xf32> to vector<2x128xf32>
    %46 = vector.shape_cast %43 : vector<2x128xf32> to vector<1x1x2x128xf32>
    tpu.vector_store %arg5[%c0_37, %c3_38, %c0_39, %c0_40], %46 {strides = array<i32>} : memref<1x4x2x128xf32, #tpu.memory_space<vmem>>, vector<1x1x2x128xf32>,
    return
  }
  func.func @transform_0(%arg0: i32, %arg1: i32, %arg2: i32) -> (i32, i32, i32) {
    %c1_i32 = arith.constant 1 : i32
    %0 = arith.muli %arg0, %c1_i32 : i32
    %1 = arith.addi %0, %arg2 : i32
    %c0_i32 = arith.constant 0 : i32
    %c0_i32_0 = arith.constant 0 : i32
    return %arg1, %1, %c0_i32 : i32, i32, i32
  }
  func.func @transform_1(%arg0: i32, %arg1: i32, %arg2: i32) -> (i32, i32, i32) {
    %c1_i32 = arith.constant 1 : i32
    %0 = arith.muli %arg0, %c1_i32 : i32
    %1 = arith.addi %0, %arg2 : i32
    %c0_i32 = arith.constant 0 : i32
    %c0_i32_0 = arith.constant 0 : i32
    return %arg1, %1, %c0_i32 : i32, i32, i32
  }
  func.func @transform_2(%arg0: i32, %arg1: i32, %arg2: i32) -> (i32, i32, i32, i32) {
    %c0_i32 = arith.constant 0 : i32
    %c0_i32_0 = arith.constant 0 : i32
    %c0_i32_1 = arith.constant 0 : i32
    return %arg0, %c0_i32, %arg1, %c0_i32_0 : i32, i32, i32, i32
  }
}

</mosaic_0001>

<llo_original>
// kernel: bce_and_dice_loss.1
$region0: #{bce_and_dice_loss.1}
  #allocation0 [shape = 'u32[]', space=smem, size = 0x4, offset = 0x4, fixed_abs, tag = 'smem constant byte address 0x4 - core index']
  #allocation1 [shape = 'u32[144,128]{1,0:T(1,128)}', space=vmem, size = 0x12000, scoped, tag = 'internal scratch']
  %s0 = inlined_call_operand.vmem [shape: f32[2,8,128], index: 0, kind: input, shape index: {}]
  %s1 = inlined_call_operand.vmem [shape: f32[2,8,128], index: 1, kind: input, shape index: {}]
  %s2 = inlined_call_operand.vmem [shape: f32[1,4,2,128], index: 2, kind: output, shape index: {}]
  %s3 = sld [smem:[#allocation0]]
  $region22: #{bce_and_dice_loss.1} parent=0
    _
  %s5 = ssub.s32 1, %s3
  %s6 = scalar_select 0, %s5, %s3
  // Predicated region
  $region2: #{bce_and_dice_loss.1} parent=0 // pred_check
    _
  $region3: #{bce_and_dice_loss.1} parent=0 // pred_check_branch
    %8 = sbr.rel (0) target = $region5
  $region4: #{bce_and_dice_loss.1} parent=0 // pred_region
    %s9 = sadd.s32 0, 0
    %p10 = scmp.lt.s32.totalorder %s9, 0
    %s11 = scalar_select %p10, %s9, 0
    %s12 = smul.addr %s11, 8
    %s13 = scalar_lea.vmem %s0, %s12
    %s14 = sadd.s32 0, 0
  $region5: #{bce_and_dice_loss.1} parent=0 // pred_fallthru
    _
  // Predicated region
  $region6: #{bce_and_dice_loss.1} parent=0 // pred_check
    _
  $region7: #{bce_and_dice_loss.1} parent=0 // pred_check_branch
    %16 = sbr.rel (0) target = $region9
  $region8: #{bce_and_dice_loss.1} parent=0 // pred_region
    %s17 = sadd.s32 0, 0
    %p18 = scmp.lt.s32.totalorder %s17, 0
    %s19 = scalar_select %p18, %s17, 0
    %s20 = smul.addr %s19, 8
    %s21 = scalar_lea.vmem %s1, %s20
    %s22 = sadd.s32 0, 0
  $region9: #{bce_and_dice_loss.1} parent=0 // pred_fallthru
    _
  %s23 = sadd.s32 0, 0
  %p24 = scmp.lt.s32.totalorder %s23, 0
  %s25 = scalar_select %p24, %s23, 0
  %s26 = smul.addr %s25, 8
  %s27 = scalar_lea.vmem %s0, %s26
  %s28 = sadd.s32 0, 0
  %p29 = scmp.lt.s32.totalorder %s28, 0
  %s30 = scalar_select %p29, %s28, 0
  %s31 = smul.addr %s30, 8
  %s32 = scalar_lea.vmem %s1, %s31
  %s33 = sadd.s32 0, 0
  %p34 = scmp.lt.s32.totalorder %s33, 0
  %s35 = scalar_select %p34, %s33, 0
  %s36 = smul.addr %s35, 8
  %s37 = scalar_lea.vmem %s0, %s36
  %s38 = sadd.s32 0, 0
  %s39 = sadd.s32 0, 0
  %p40 = scmp.lt.s32.totalorder %s39, 0
  %s41 = scalar_select %p40, %s39, 0
  %s42 = smul.addr %s41, 8
  %s43 = scalar_lea.vmem %s1, %s42
  %s44 = sadd.s32 0, 0
  %p45 = scmp.eq.s32.totalorder 0, 0
  // Predicated region
  $region10: #{bce_and_dice_loss.1} parent=0 // pred_check
    %p46 = pneg %p45
  $region11: #{bce_and_dice_loss.1} parent=0 // pred_check_branch
    %48 = sbr.rel (%p46) target = $region13
  $region12: #{bce_and_dice_loss.1} parent=0 // pred_region
    %49 = vst [vmem:[%s2] sm:$0x3] 0.0
    %50 = vst [vmem:[%s2 + $0x2] sm:$0x3] 0.0
    %51 = vst [vmem:[%s2 + $0x4] sm:$0x3] 0.0
    %52 = vst [vmem:[%s2 + $0x6] sm:$0x3] 0.0
  $region13: #{bce_and_dice_loss.1} parent=0 // pred_fallthru
    _
  %v53 = vld [vmem:[%s37] sm:$0xff]
  %v54 = vld [vmem:[%s37 + $0x8] sm:$0xff]
  %v55 = vld [vmem:[%s43] sm:$0xff]
  %v56 = vld [vmem:[%s43 + $0x8] sm:$0xff]
  %v57 = vlog2.pop %v53
  %v58 = vmul.f32 %v57, 0.6931472
  %v59 = vlog2.pop %v54
  %v60 = vmul.f32 %v59, 0.6931472
  %v61 = vmax.f32 %v58, -100.0
  %v62 = vmax.f32 %v60, -100.0
  %v63 = vsub.f32 1.0, %v53
  %v64 = vsub.f32 1.0, %v54
  %v65 = vlog2.pop %v63
  %v66 = vmul.f32 %v65, 0.6931472
  %v67 = vlog2.pop %v64
  %v68 = vmul.f32 %v67, 0.6931472
  %v69 = vmax.f32 %v66, -100.0
  %v70 = vmax.f32 %v68, -100.0
  %v71 = vsub.f32 %v61, %v69
  %v72 = vsub.f32 %v62, %v70
  %v73 = vmul.f32 %v55, %v71
  %v74 = vmul.f32 %v56, %v72
  %v75 = vadd.f32 %v73, %v69
  %v76 = vadd.f32 %v74, %v70
  %v77 = vfloor.f32 %v53
  %v78 = vfloor.f32 %v54
  %v79 = vfloor.f32 %v55
  %v80 = vfloor.f32 %v56
  %v81 = vld [vmem:[%s2] sm:$0x3]
  %v82 = vrot.slane %v75, 4
  %v83 = vadd.f32 %v75, %v82
  %v84 = vrot.slane %v83, 2
  %v85 = vadd.f32 %v83, %v84
  %v86 = vrot.slane %v85, 1
  %v87 = vadd.f32 %v85, %v86
  %v88 = vrot.slane %v76, 4
  %v89 = vadd.f32 %v76, %v88
  %v90 = vrot.slane %v89, 2
  %v91 = vadd.f32 %v89, %v90
  %v92 = vrot.slane %v91, 1
  %v93 = vadd.f32 %v91, %v92
  %vm96 = vcmask 1041409
  %v97 = vsel %vm96, %v93, %v87
  %v99 = vadd.f32 %v81, %v97
  %100 = vst [vmem:[%s2] sm:$0x3] %v99
  %s101 = scalar_lea.vmem %s2, 2
  %v102 = vld [vmem:[%s101] sm:$0x3]
  %v103 = vmul.f32 %v77, %v79
  %v104 = vmul.f32 %v78, %v80
  %v105 = vrot.slane %v103, 4
  %v106 = vadd.f32 %v103, %v105
  %v107 = vrot.slane %v106, 2
  %v108 = vadd.f32 %v106, %v107
  %v109 = vrot.slane %v108, 1
  %v110 = vadd.f32 %v108, %v109
  %v111 = vrot.slane %v104, 4
  %v112 = vadd.f32 %v104, %v111
  %v113 = vrot.slane %v112, 2
  %v114 = vadd.f32 %v112, %v113
  %v115 = vrot.slane %v114, 1
  %v116 = vadd.f32 %v114, %v115
  %v119 = vsel %vm96, %v116, %v110
  %v121 = vadd.f32 %v102, %v119
  %122 = vst [vmem:[%s101] sm:$0x3] %v121
  %s123 = scalar_lea.vmem %s2, 4
  %v124 = vld [vmem:[%s123] sm:$0x3]
  %v125 = vrot.slane %v77, 4
  %v126 = vadd.f32 %v77, %v125
  %v127 = vrot.slane %v126, 2
  %v128 = vadd.f32 %v126, %v127
  %v129 = vrot.slane %v128, 1
  %v130 = vadd.f32 %v128, %v129
  %v131 = vrot.slane %v78, 4
  %v132 = vadd.f32 %v78, %v131
  %v133 = vrot.slane %v132, 2
  %v134 = vadd.f32 %v132, %v133
  %v135 = vrot.slane %v134, 1
  %v136 = vadd.f32 %v134, %v135
  %v139 = vsel %vm96, %v136, %v130
  %v141 = vadd.f32 %v124, %v139
  %142 = vst [vmem:[%s123] sm:$0x3] %v141
  %s143 = scalar_lea.vmem %s2, 6
  %v144 = vld [vmem:[%s143] sm:$0x3]
  %v145 = vrot.slane %v79, 4
  %v146 = vadd.f32 %v79, %v145
  %v147 = vrot.slane %v146, 2
  %v148 = vadd.f32 %v146, %v147
  %v149 = vrot.slane %v148, 1
  %v150 = vadd.f32 %v148, %v149
  %v151 = vrot.slane %v80, 4
  %v152 = vadd.f32 %v80, %v151
  %v153 = vrot.slane %v152, 2
  %v154 = vadd.f32 %v152, %v153
  %v155 = vrot.slane %v154, 1
  %v156 = vadd.f32 %v154, %v155
  %v159 = vsel %vm96, %v156, %v150
  %v161 = vadd.f32 %v144, %v159
  %162 = vst [vmem:[%s143] sm:$0x3] %v161
  // Predicated region
  $region14: #{bce_and_dice_loss.1} parent=0 // pred_check
    _
  $region15: #{bce_and_dice_loss.1} parent=0 // pred_check_branch
    %164 = sbr.rel (0) target = $region17
  $region16: #{bce_and_dice_loss.1} parent=0 // pred_region
    _
  $region17: #{bce_and_dice_loss.1} parent=0 // pred_fallthru
    _
  // Predicated region
  $region18: #{bce_and_dice_loss.1} parent=0 // pred_check
    _
  $region19: #{bce_and_dice_loss.1} parent=0 // pred_check_branch
    %166 = sbr.rel (0) target = $region21
  $region20: #{bce_and_dice_loss.1} parent=0 // pred_region
    _
  $region21: #{bce_and_dice_loss.1} parent=0 // pred_fallthru
    _

</llo_original>
